<compile_context>
chip_gen: v7x
topology: tpu7x:2x2x1
jax: 0.10.0
libtpu: 0.0.40
codegen_flags: <defaults>
</compile_context>

<pallas_src>
import functools

import jax
import jax.numpy as jnp
from jax.experimental import pallas as pl
from jax.experimental.pallas import tpu as pltpu


# ----------------------------- STFT (fused real-DFT matmul) ------------------
def _stft_kernel(fr_ref, basis_ref, out_ref):
    # frames (1, T, N) @ basis (N, 2*Fpad) -> (1, T, 2*Fpad); window & norm are
    # already folded into the basis, real|imag fused side by side.
    out_ref[0] = jnp.dot(fr_ref[0], basis_ref[...],
                         preferred_element_type=jnp.float32).astype(out_ref.dtype)


def stft_pallas(frames, basis, out_dtype=jnp.bfloat16):
    """frames: (BC, T, N) bf16; basis: (N, 2*Fpad) bf16 (window folded in)."""
    BC, T, N = frames.shape
    F2 = basis.shape[1]
    return pl.pallas_call(
        _stft_kernel,
        out_shape=jax.ShapeDtypeStruct((BC, T, F2), out_dtype),
        grid_spec=pltpu.PrefetchScalarGridSpec(
            num_scalar_prefetch=0,
            grid=(BC,),
            in_specs=[
                pl.BlockSpec((1, T, N), lambda b: (b, 0, 0)),
                pl.BlockSpec((N, F2), lambda b: (0, 0)),
            ],
            out_specs=pl.BlockSpec((1, T, F2), lambda b: (b, 0, 0)),
        ),
        compiler_params=pltpu.CompilerParams(dimension_semantics=("parallel",)),
    )(frames, basis)


# ----------------------------- Conv2d (+ optional LeakyReLU) ------------------
def _conv2d_kernel(x_ref, w_ref, b_ref, o_ref, acc_ref, *, KH, KW, dh, dw, sw,
                   OH, OW, negative_slope):
    # Grid: (batch, cout_tile, kh).  kh is the innermost reduction axis.
    kh = pl.program_id(2)

    @pl.when(kh == 0)
    def _init():
        acc_ref[...] = jnp.zeros_like(acc_ref)

    cin = x_ref.shape[-1]
    for kw in range(KW):                       # static inner loop over W taps
        phase = (kw * dw) % sw                 # which column-phase array
        col0 = (kw * dw) // sw                 # contiguous start inside it
        xv = x_ref.at[phase, 0]                # (Hp, Wq, Cin) view, no load
        patch = xv[pl.ds(kh * dh, OH), pl.ds(col0, OW), :]   # (OH, OW, Cin)
        acc_ref[...] += jnp.dot(patch.reshape(OH * OW, cin), w_ref[0, kw],
                                preferred_element_type=jnp.float32)

    @pl.when(kh == KH - 1)
    def _finalize():
        out = acc_ref[...] + b_ref[...]        # (OH*OW, TCout) + (1, TCout)
        if negative_slope is not None:
            out = jnp.where(out > 0, out, negative_slope * out)
        o_ref[0] = out.reshape(OH, OW, -1).astype(o_ref.dtype)


def _pick_cout_tile(cout):
    if cout % 256 == 0:
        return 256
    if cout % 128 == 0:
        return 128
    return cout


def conv2d_pallas(x, w, b, *, stride=(1, 1), dilation=(1, 1), padding=(0, 0),
                  negative_slope=None, out_dtype=jnp.bfloat16):
    """x: (B, H, W, Cin) NHWC; w: (KH, KW, Cin, Cout); b: (Cout,)."""
    B, H, W, Cin = x.shape
    KH, KW, _, Cout = w.shape
    sh, sw = stride
    dh, dw = dilation
    ph, pw = padding
    assert sh == 1  # TODO(synk): time-axis stride > 1 (module always uses stride=(1,2))

    xp = jnp.pad(x.astype(jnp.bfloat16), ((0, 0), (ph, ph), (pw, pw), (0, 0)))
    Hp, Wp = H + 2 * ph, W + 2 * pw
    OH = Hp - dh * (KH - 1)
    OW = (Wp - dw * (KW - 1) - 1) // sw + 1

    # Phase-split the W (frequency) axis so strided layers load contiguously
    # inside the kernel and only strided outputs are computed.
    if sw == 1:
        xph = xp[None]                                     # (1, B, Hp, Wp, Cin)
        Wq = Wp
    else:
        Wq = -(-Wp // sw)
        xpad = jnp.pad(xp, ((0, 0), (0, 0), (0, Wq * sw - Wp), (0, 0)))
        xph = jnp.moveaxis(xpad.reshape(B, Hp, Wq, sw, Cin), 3, 0)

    wb = w.astype(jnp.bfloat16)                            # (KH, KW, Cin, Cout)
    b2 = b.reshape(1, Cout).astype(jnp.float32)
    tco = _pick_cout_tile(Cout)
    n_phase = xph.shape[0]

    kern = functools.partial(_conv2d_kernel, KH=KH, KW=KW, dh=dh, dw=dw, sw=sw,
                             OH=OH, OW=OW, negative_slope=negative_slope)
    # TODO(synk): add an OH-tile grid axis (halo'd row blocks) for production
    # STFT sizes; toy shapes fit comfortably in VMEM with full per-batch rows.
    return pl.pallas_call(
        kern,
        out_shape=jax.ShapeDtypeStruct((B, OH, OW, Cout), out_dtype),
        grid_spec=pltpu.PrefetchScalarGridSpec(
            num_scalar_prefetch=0,
            grid=(B, Cout // tco, KH),
            in_specs=[
                pl.BlockSpec((n_phase, 1, Hp, Wq, Cin),
                             lambda bb, j, kh: (0, bb, 0, 0, 0)),
                pl.BlockSpec((1, KW, Cin, tco),
                             lambda bb, j, kh: (kh, 0, 0, j)),
                pl.BlockSpec((1, tco), lambda bb, j, kh: (0, j)),
            ],
            out_specs=pl.BlockSpec((1, OH, OW, tco),
                                   lambda bb, j, kh: (bb, 0, 0, j)),
            scratch_shapes=[pltpu.VMEM((OH * OW, tco), jnp.float32)],
        ),
        compiler_params=pltpu.CompilerParams(
            dimension_semantics=("parallel", "parallel", "arbitrary")),
    )(xph, wb, b2)


# ----------------------------- Module -----------------------------------------
def get_2d_padding(kernel_size, dilation=(1, 1)):
    return ((kernel_size[0] - 1) * dilation[0] // 2,
            (kernel_size[1] - 1) * dilation[1] // 2)


class DiscriminatorSTFTPallas:
    def __init__(self, n_filters, in_channels=1, out_channels=1, n_fft=1024,
                 hop_length=256, win_length=1024, max_filters=1024,
                 filters_scale=1, kernel_size=(3, 9), dilations=(1, 2, 4),
                 stride=(1, 2), normalized=True,
                 activation_params={"negative_slope": 0.2}, seed=0):
        assert win_length == n_fft  # TODO(synk): centered window-pad when win_length < n_fft
        self.n_fft = n_fft
        self.hop_length = hop_length
        self.win_length = win_length
        self.normalized = normalized
        self.negative_slope = activation_params["negative_slope"]
        self.in_channels = in_channels

        spec_channels = 2 * in_channels
        cfgs = []  # (in_chs, out_chs, kernel, stride, dilation, padding)
        cfgs.append((spec_channels, n_filters, kernel_size, (1, 1), (1, 1),
                     get_2d_padding(kernel_size)))
        in_chs = min(filters_scale * n_filters, max_filters)
        for i, d in enumerate(dilations):
            out_chs = min(filters_scale ** (i + 1) * n_filters, max_filters)
            cfgs.append((in_chs, out_chs, kernel_size, stride, (d, 1),
                         get_2d_padding(kernel_size, (d, 1))))
            in_chs = out_chs
        out_chs = min(filters_scale ** (len(dilations) + 1) * n_filters,
                      max_filters)
        k2 = (kernel_size[0], kernel_size[0])
        cfgs.append((in_chs, out_chs, k2, (1, 1), (1, 1), get_2d_padding(k2)))
        self.conv_cfgs = cfgs
        self.post_cfg = (out_chs, out_channels, k2, (1, 1), (1, 1),
                         get_2d_padding(k2))

        # Deterministic synthetic weights (weight_norm at init == plain conv).
        key = jax.random.PRNGKey(seed)
        self.params = []
        for (ci, co, k, _s, _d, _p) in cfgs + [self.post_cfg]:
            key, kw_, kb_ = jax.random.split(key, 3)
            w = 0.1 * jax.random.normal(kw_, (k[0], k[1], ci, co), jnp.float32)
            b = 0.01 * jax.random.normal(kb_, (co,), jnp.float32)
            self.params.append((w, b))

        # Periodic Hann window and 1/sqrt(sum(window^2)) normalization folded
        # into the one-sided real-DFT basis; real & imag fused side by side and
        # zero-padded to a lane-dense multiple of 128.
        n = jnp.arange(self.win_length, dtype=jnp.float32)
        window = 0.5 * (1.0 - jnp.cos(2.0 * jnp.pi * n / self.win_length))
        norm = jnp.sqrt(jnp.sum(window ** 2)) if normalized else jnp.float32(1.0)
        self.nf = self.n_fft // 2 + 1
        self.f_pad = ((self.nf + 127) // 128) * 128
        t = jnp.arange(self.n_fft, dtype=jnp.float32)
        f = jnp.arange(self.nf, dtype=jnp.float32)
        ang = 2.0 * jnp.pi * f[None, :] * t[:, None] / self.n_fft
        wcos = (window[:, None] * jnp.cos(ang)) / norm        # (N, nf)
        wnsin = (window[:, None] * (-jnp.sin(ang))) / norm
        pad = ((0, 0), (0, self.f_pad - self.nf))
        self.basis = jnp.concatenate(
            [jnp.pad(wcos, pad), jnp.pad(wnsin, pad)], axis=1
        ).astype(jnp.bfloat16)                                # (N, 2*Fpad)

    def spec_transform(self, x):
        """x: (B, C, L) -> (B, C, T, 2, Fpad) bf16 ([real | imag], lane-padded)."""
        B, C, L = x.shape
        N = self.n_fft
        T = (L - N) // self.hop_length + 1                    # center=False
        idx = (jnp.arange(T)[:, None] * self.hop_length
               + jnp.arange(N)[None, :])                      # (T, N)
        # TODO(synk): in-kernel framing (pl.ANY HBM ref + strided DMA) to avoid
        # the 4x overlap materialization; negligible at these sizes.
        frames = x[:, :, idx].reshape(B * C, T, N).astype(jnp.bfloat16)
        out = stft_pallas(frames, self.basis)                 # (B*C, T, 2*Fpad)
        return out.reshape(B, C, T, 2, self.f_pad)

    def __call__(self, x):
        B, C, _ = x.shape
        spec = self.spec_transform(x)                         # (B, C, T, 2, Fpad)
        T = spec.shape[2]
        # torch: cat([real, imag], dim=1) then 'b c w t -> b c t w' (NCHW);
        # build the NHWC equivalent (B, T, F, 2C) directly with one transpose.
        z = jnp.transpose(spec, (0, 2, 4, 3, 1))[:, :, :self.nf]
        z = z.reshape(B, T, self.nf, 2 * C)
        fmap = []
        for cfg, (w, b) in zip(self.conv_cfgs, self.params[:-1]):
            _ci, _co, _k, s, d, p = cfg
            z = conv2d_pallas(z, w, b, stride=s, dilation=d, padding=p,
                              negative_slope=self.negative_slope,
                              out_dtype=jnp.bfloat16)
            fmap.append(jnp.transpose(z, (0, 3, 1, 2)).astype(jnp.float32))  # NCHW
        _ci, _co, _k, s, d, p = self.post_cfg
        wp, bp = self.params[-1]
        z = conv2d_pallas(z, wp, bp, stride=s, dilation=d, padding=p,
                          negative_slope=None, out_dtype=jnp.float32)
        z = jnp.transpose(z, (0, 3, 1, 2))                    # NCHW output
        return z, fmap


if __name__ == "__main__":
    # Small, shape-consistent configuration.
    B, C = 2, 1
    n_fft, hop, win = 64, 16, 64
    n_filters = 8
    L = 304  # -> 16 STFT frames (center=False), F = 33 bins (padded to 128)

    disc = DiscriminatorSTFTPallas(
        n_filters, in_channels=C, out_channels=1,
        n_fft=n_fft, hop_length=hop, win_length=win)

    x = jax.random.normal(jax.random.PRNGKey(0), (B, C, L), jnp.float32)
    z, fmap = disc(x)
    jax.block_until_ready((z, fmap))
    print("KERNEL_OK")
</pallas_src>

<mosaic_0001>
module attributes {stable_mosaic.version = 11 : i64} {
  func.func @_stft_kernel(%arg0: i32, %arg1: memref<1x16x64xbf16, #tpu.memory_space<vmem>>, %arg2: memref<64x256xbf16, #tpu.memory_space<vmem>>, %arg3: memref<1x16x256xbf16, #tpu.memory_space<vmem>>) attributes {dimension_semantics = [#tpu.dimension_semantics<parallel>], iteration_bounds = array<i64: 2>, scalar_prefetch = 0 : i64, scratch_operands = 0 : i64, tpu.core_type = #tpu.core_type<tc>, window_params = [{transform_indices = @transform_0, window_bounds = array<i64: 1, 16, 64>}, {pipeline_mode = #tpu.pipeline_mode<synchronous>, transform_indices = @transform_1, window_bounds = array<i64: 64, 256>}, {transform_indices = @transform_2, window_bounds = array<i64: 1, 16, 256>}]} {
    %c0 = arith.constant 0 : index
    %c0_0 = arith.constant 0 : index
    %c0_1 = arith.constant 0 : index
    %0 = vector.load %arg1[%c0, %c0_0, %c0_1] : memref<1x16x64xbf16, #tpu.memory_space<vmem>>, vector<1x16x64xbf16>
    %1 = vector.shape_cast %0 : vector<1x16x64xbf16> to vector<16x64xbf16>
    %c0_2 = arith.constant 0 : index
    %c0_3 = arith.constant 0 : index
    %2 = vector.load %arg2[%c0_2, %c0_3] : memref<64x256xbf16, #tpu.memory_space<vmem>>, vector<64x256xbf16>
    %cst = arith.constant dense<0.000000e+00> : vector<16x256xf32>
    %3 = tpu.matmul %1, %2, %cst {dimension_numbers = #tpu.dot_dimension_numbers<[1], [0], [0], [1], [0, 0, 1, 1], [], []>} : vector<16x64xbf16>, vector<64x256xbf16>, vector<16x256xf32> -> vector<16x256xf32>
    %4 = arith.truncf %3 : vector<16x256xf32> to vector<16x256xbf16>
    %c0_4 = arith.constant 0 : index
    %c0_5 = arith.constant 0 : index
    %c0_6 = arith.constant 0 : index
    %5 = vector.load %arg3[%c0_4, %c0_5, %c0_6] : memref<1x16x256xbf16, #tpu.memory_space<vmem>>, vector<1x16x256xbf16>
    %6 = vector.shape_cast %5 : vector<1x16x256xbf16> to vector<16x256xbf16>
    %7 = vector.shape_cast %4 : vector<16x256xbf16> to vector<1x16x256xbf16>
    tpu.vector_store %arg3[%c0_4, %c0_5, %c0_6], %7 {strides = array<i32>} : memref<1x16x256xbf16, #tpu.memory_space<vmem>>, vector<1x16x256xbf16>,
    return
  }
  func.func @transform_0(%arg0: i32) -> (i32, i32, i32) {
    %c0_i32 = arith.constant 0 : i32
    %c0_i32_0 = arith.constant 0 : i32
    %c0_i32_1 = arith.constant 0 : i32
    return %arg0, %c0_i32, %c0_i32_0 : i32, i32, i32
  }
  func.func @transform_1(%arg0: i32) -> (i32, i32) {
    %c0_i32 = arith.constant 0 : i32
    %c0_i32_0 = arith.constant 0 : i32
    %c0_i32_1 = arith.constant 0 : i32
    return %c0_i32, %c0_i32_0 : i32, i32
  }
  func.func @transform_2(%arg0: i32) -> (i32, i32, i32) {
    %c0_i32 = arith.constant 0 : i32
    %c0_i32_0 = arith.constant 0 : i32
    %c0_i32_1 = arith.constant 0 : i32
    return %arg0, %c0_i32, %c0_i32_0 : i32, i32, i32
  }
}

</mosaic_0001>

<llo_original>
// kernel: tpu_custom_call.1
$region0: #{tpu_custom_call.1}
  #allocation0 [shape = 'u32[]', space=smem, size = 0x4, offset = 0x4, fixed_abs, tag = 'smem constant byte address 0x4 - core index']
  #allocation1 [shape = 'u32[144,128]{1,0:T(1,128)}', space=vmem, size = 0x12000, scoped, tag = 'internal scratch']
  %s0 = inlined_call_operand.hbm [shape: bf16[2,16,64], index: 0, kind: input, shape index: {}]
  %s1 = inlined_call_operand.hbm [shape: bf16[64,256], index: 1, kind: input, shape index: {}]
  %s2 = inlined_call_operand.hbm [shape: bf16[2,16,256], index: 2, kind: output, shape index: {}]
  %s3 = sld [smem:[#allocation0]]
  $region49: #{tpu_custom_call.1} parent=0
    _
  %s5 = ssub.s32 1, %s3
  %s6 = scalar_select 0, %s5, %s3
  $region1: #{tpu_custom_call.1} parent=0
    #allocation2 [shape = 'u8[8192]{0}', space=vmem, size = 0x2000, scoped, tag = 'input window, operand 0']
    #allocation3 [shape = 's32[2]{0}', space=sflag, size = 0x8, scoped, tag = 'scoped memory for tpu_custom_call.1']
    #allocation4 [shape = 's32[2]{0}', space=sflag, size = 0x8, scoped, tag = 'scoped memory for tpu_custom_call.1']
    #allocation5 [shape = 'u8[32768]{0}', space=vmem, size = 0x8000, scoped, tag = 'input window, operand 1, single buffered']
    #allocation6 [shape = 's32[1]{0}', space=sflag, size = 0x4, scoped, tag = 'scoped memory for tpu_custom_call.1']
    #allocation7 [shape = 'u8[16384]{0}', space=vmem, size = 0x4000, scoped, tag = 'output window, operand 0']
    %7 = vsyncpa [#allocation3], 0
    %s8 = scalar_lea.sflag [#allocation3], 1
    %9 = vsyncpa %s8, 0
    %10 = vsyncpa [#allocation6], 0
    %11 = vsyncpa [#allocation4], 0
    %s12 = scalar_lea.sflag [#allocation4], 1
    %13 = vsyncpa %s12, 0
    loop: start=0, step=1, limit=4
    $region2: #{tpu_custom_call.1} parent=1 // loop_pre_header
      _
    $region3: #{tpu_custom_call.1} parent=1 // loop_header
      %s15 = sphi 0, %s19
      %p16 = scmp.ge.s32.totalorder %s15, 4
      %s25 = sphi 0, %s27
      %s28 = sphi 0, %s25
      %s29 = sphi 0, %s28
      %s45 = sphi 0, %s29
      %s49 = sphi 0, %s49
      %s51 = sphi 0, %s49
      %s52 = sphi 0, %s51
      %s66 = sphi 0, %s52
      %s72 = sphi 0, %s74
      %s75 = sphi 0, %s72
      %s76 = sphi 0, %s75
      %s92 = sphi 0, %s76
    $region4: #{tpu_custom_call.1} parent=1 // loop_header_branch
      %18 = sbr.rel (%p16) target = $region8
    $region5: #{tpu_custom_call.1} parent=1 // loop_body
      %s20 = ssub.s32 %s15, 1
      %s21 = ssub.s32 %s15, 2
      %s22 = sadd.s32 %s15, 1
      %s23 = ssub.s32 %s15, %s22
      %p24 = scmp.eq.s32.totalorder %s23, 0
      %s26 = sadd.s32 %s25, 1
      %s27 = scalar_select %p24, %s25, %s26
      %p30 = pneg %p24
      %p31 = scmp.eq.s32.totalorder %s15, 1
      %p32 = por %p30, %p31
      %p33 = scmp.ne.s32.totalorder %s25, %s28
      %p34 = scmp.eq.s32.totalorder %s15, 0
      %p35 = por %p33, %p34
      %p36 = scmp.ne.s32.totalorder %s25, %s28
      %p37 = scmp.eq.s32.totalorder %s20, 1
      %p38 = por %p36, %p37
      %p39 = scmp.ne.s32.totalorder %s28, %s29
      %p40 = scmp.eq.s32.totalorder %s20, 0
      %p41 = por %p39, %p40
      %p42 = scmp.ne.s32.totalorder %s28, %s29
      %p43 = scmp.eq.s32.totalorder %s21, 1
      %p44 = por %p42, %p43
      %p46 = scmp.ne.s32.totalorder %s29, %s45
      %p47 = scmp.eq.s32.totalorder %s21, 0
      %p48 = por %p46, %p47
      %s50 = sadd.s32 %s49, 1
      %p53 = scmp.eq.s32.totalorder %s15, 1
      %p54 = scmp.ne.s32.totalorder %s49, %s51
      %p55 = scmp.eq.s32.totalorder %s15, 0
      %p56 = por %p54, %p55
      %p57 = scmp.ne.s32.totalorder %s49, %s51
      %p58 = scmp.eq.s32.totalorder %s20, 1
      %p59 = por %p57, %p58
      %p60 = scmp.ne.s32.totalorder %s51, %s52
      %p61 = scmp.eq.s32.totalorder %s20, 0
      %p62 = por %p60, %p61
      %p63 = scmp.ne.s32.totalorder %s51, %s52
      %p64 = scmp.eq.s32.totalorder %s21, 1
      %p65 = por %p63, %p64
      %p67 = scmp.ne.s32.totalorder %s52, %s66
      %p68 = scmp.eq.s32.totalorder %s21, 0
      %p69 = por %p67, %p68
      %s70 = ssub.s32 %s15, %s22
      %p71 = scmp.eq.s32.totalorder %s70, 0
      %s73 = sadd.s32 %s72, 1
      %s74 = scalar_select %p71, %s72, %s73
      %p77 = pneg %p71
      %p78 = scmp.eq.s32.totalorder %s15, 1
      %p79 = por %p77, %p78
      %p80 = scmp.ne.s32.totalorder %s72, %s75
      %p81 = scmp.eq.s32.totalorder %s15, 0
      %p82 = por %p80, %p81
      %p83 = scmp.ne.s32.totalorder %s72, %s75
      %p84 = scmp.eq.s32.totalorder %s20, 1
      %p85 = por %p83, %p84
      %p86 = scmp.ne.s32.totalorder %s75, %s76
      %p87 = scmp.eq.s32.totalorder %s20, 0
      %p88 = por %p86, %p87
      %p89 = scmp.ne.s32.totalorder %s75, %s76
      %p90 = scmp.eq.s32.totalorder %s21, 1
      %p91 = por %p89, %p90
      %p93 = scmp.ne.s32.totalorder %s76, %s92
      %p94 = scmp.eq.s32.totalorder %s21, 0
      %p95 = por %p93, %p94
      %p96 = scmp.le.s32.totalorder 1, %s15
      %p97 = scmp.lt.s32.totalorder %s15, 3
      %p98 = pnand %p96, %p97
      %p99 = pneg %p98
      // Predicated region
      $region9: #{tpu_custom_call.1} parent=5 // pred_check
        _
      $region10: #{tpu_custom_call.1} parent=5 // pred_check_branch
        %101 = sbr.rel (%p98) target = $region12
      $region11: #{tpu_custom_call.1} parent=5 // pred_region
        %s102 = ssub.s32 %s15, 1
        // Predicated region
        $region13: #{tpu_custom_call.1} parent=11 // pred_check
          %p103 = pneg %p62
        $region14: #{tpu_custom_call.1} parent=11 // pred_check_branch
          %105 = sbr.rel (%p103) target = $region16
        $region15: #{tpu_custom_call.1} parent=11 // pred_region
          %s107 = ssub.s32 1024, 1024
          %108 = vsyncadd [#allocation6], %s107
          %s109 = sshll.u32 [#allocation5], 4
          %s110 = int_to_ptr.vmem [resolvable:$true] %s109
          %115 = dma.hbm_to_vmem [thread:$0]  %s1, 1024, %s110, [#allocation6], 128, 128, 8
        $region16: #{tpu_custom_call.1} parent=11 // pred_fallthru
          _
      $region12: #{tpu_custom_call.1} parent=5 // pred_fallthru
        _
      %p116 = scmp.lt.s32.totalorder %s15, 2
      // Predicated region
      $region17: #{tpu_custom_call.1} parent=5 // pred_check
        %p117 = pneg %p116
      $region18: #{tpu_custom_call.1} parent=5 // pred_check_branch
        %119 = sbr.rel (%p117) target = $region20
      $region19: #{tpu_custom_call.1} parent=5 // pred_region
        // Predicated region
        $region21: #{tpu_custom_call.1} parent=19 // pred_check
          %p120 = pneg %p35
        $region22: #{tpu_custom_call.1} parent=19 // pred_check_branch
          %122 = sbr.rel (%p120) target = $region24
        $region23: #{tpu_custom_call.1} parent=19 // pred_region
          %s123 = sand.u32 %s25, 1
          %s124 = scalar_lea.sflag [#allocation3], %s123
          %s125 = sand.u32 %s25, 1
          %s126 = smul.addr %s125, 8
          %s127 = scalar_lea.vmem [#allocation2], %s126
          %s129 = ssub.s32 128, 128
          %130 = vsyncadd %s124, %s129
          %s131 = smul.addr %s15, 2
          %s132 = smul.addr %s131, 64
          %s133 = scalar_lea.hbm %s0, %s132
          %s134 = sshll.u32 %s127, 4
          %s135 = int_to_ptr.vmem [resolvable:$true] %s134
          %140 = dma.hbm_to_vmem [thread:$0]  %s133, 128, %s135, %s124, 64, 64, 4
        $region24: #{tpu_custom_call.1} parent=19 // pred_fallthru
          _
      $region20: #{tpu_custom_call.1} parent=5 // pred_fallthru
        _
      %p141 = scmp.le.s32.totalorder 1, %s15
      %p142 = scmp.lt.s32.totalorder %s15, 3
      %p143 = pnand %p141, %p142
      %p144 = pneg %p143
      // Predicated region
      $region25: #{tpu_custom_call.1} parent=5 // pred_check
        _
      $region26: #{tpu_custom_call.1} parent=5 // pred_check_branch
        %146 = sbr.rel (%p143) target = $region28
      $region27: #{tpu_custom_call.1} parent=5 // pred_region
        %s147 = ssub.s32 %s15, 1
        %s148 = sand.u32 %s28, 1
        %s149 = scalar_lea.sflag [#allocation3], %s148
        %s150 = sand.u32 %s28, 1
        %s151 = smul.addr %s150, 8
        %s152 = scalar_lea.vmem [#allocation2], %s151
        // Predicated region
        $region29: #{tpu_custom_call.1} parent=27 // pred_check
          %p153 = pneg %p41
        $region30: #{tpu_custom_call.1} parent=27 // pred_check_branch
          %155 = sbr.rel (%p153) target = $region32
        $region31: #{tpu_custom_call.1} parent=27 // pred_region
          %156 = dma.done %s149, 128
        $region32: #{tpu_custom_call.1} parent=27 // pred_fallthru
          _
        // Predicated region
        $region33: #{tpu_custom_call.1} parent=27 // pred_check
          %p157 = pneg %p62
        $region34: #{tpu_custom_call.1} parent=27 // pred_check_branch
          %159 = sbr.rel (%p157) target = $region36
        $region35: #{tpu_custom_call.1} parent=27 // pred_region
          %160 = dma.done [#allocation6], 1024
        $region36: #{tpu_custom_call.1} parent=27 // pred_fallthru
          _
        %s161 = sand.u32 %s28, 1
        %s162 = scalar_lea.sflag [#allocation3], %s161
        %s163 = sand.u32 %s28, 1
        %s164 = smul.addr %s163, 8
        %s165 = scalar_lea.vmem [#allocation2], %s164
        %p166 = pneg %p41
        %p167 = pneg %p38
        %p168 = pneg %p62
        %p169 = pneg %p59
        %p170 = pneg %p88
        %p171 = pneg %p85
        %s172 = sand.u32 %s75, 1
        %s173 = scalar_lea.sflag [#allocation4], %s172
        %s174 = sand.u32 %s75, 1
        %s175 = smul.addr %s174, 16
        %s176 = scalar_lea.vmem [#allocation7], %s175
        %v178 = vld [vmem:[%s152] sm:$0xf]
        %v179 = vld [vmem:[%s152 + $0x4] sm:$0xf]
        %v180 = vld [vmem:[#allocation5] sm:$0xff]
        %v181 = vld [vmem:[#allocation5 + $0x8] sm:$0xff]
        %v182 = vld [vmem:[#allocation5 + $0x10] sm:$0xff]
        %v183 = vld [vmem:[#allocation5 + $0x18] sm:$0xff]
        %v184 = vld [vmem:[#allocation5 + $0x20] sm:$0xff]
        %v185 = vld [vmem:[#allocation5 + $0x28] sm:$0xff]
        %v186 = vld [vmem:[#allocation5 + $0x30] sm:$0xff]
        %v187 = vld [vmem:[#allocation5 + $0x38] sm:$0xff]
        %v190 = vunpack.c.l.b16 %v178
        %v191 = vunpack.c.l.b16 %v179
        %v192 = vpack.c.b16 %v191, %v190
        %v201 = vunpack.c.l.b16 %v180
        %v202 = vunpack.c.h.b16 %v180
        %v203 = vunpack.c.l.b16 %v181
        %v204 = vunpack.c.h.b16 %v181
        %v205 = vunpack.c.l.b16 %v182
        %v206 = vunpack.c.h.b16 %v182
        %v207 = vunpack.c.l.b16 %v183
        %v208 = vunpack.c.h.b16 %v183
        %v209 = vunpack.c.l.b16 %v184
        %v210 = vunpack.c.h.b16 %v184
        %v211 = vunpack.c.l.b16 %v185
        %v212 = vunpack.c.h.b16 %v185
        %v213 = vunpack.c.l.b16 %v186
        %v214 = vunpack.c.h.b16 %v186
        %v215 = vunpack.c.l.b16 %v187
        %v216 = vunpack.c.h.b16 %v187
        %v217 = vpack.c.b16 %v203, %v201
        %v218 = vpack.c.b16 %v204, %v202
        %v219 = vpack.c.b16 %v207, %v205
        %v220 = vpack.c.b16 %v208, %v206
        %v221 = vpack.c.b16 %v211, %v209
        %v222 = vpack.c.b16 %v212, %v210
        %v223 = vpack.c.b16 %v215, %v213
        %v224 = vpack.c.b16 %v216, %v214
        %vm233 = vcmask 523264
        %v235 = vsel %vm233, %v192, 0
        %237 = vmatprep.subr.bf16.mxu0 %v218
        %238 = vmatpush1.bf16.msra.mxu0 %v217
        %239 = vmatprep.subr.bf16.mxu0 %v220
        %240 = vmatpush1.bf16.msra.mxu0 %v219
        %241 = vmatprep.subr.bf16.mxu0 %v222
        %242 = vmatpush1.bf16.msra.mxu0 %v221
        %243 = vmatprep.subr.bf16.mxu0 %v224
        %244 = vmatpush1.bf16.msra.mxu0 %v223
        %245 = vmatprep.subr.bf16.mxu0 0
        %246 = vmatpush1.bf16.msra.mxu0 0
        %247 = vmatprep.subr.bf16.mxu0 0
        %248 = vmatpush1.bf16.msra.mxu0 0
        %249 = vmatprep.subr.bf16.mxu0 0
        %250 = vmatpush1.bf16.msra.mxu0 0
        %251 = vmatprep.subr.bf16.mxu0 0
        %252 = vmatpush1.bf16.msra.mxu0 0
        %253 = vmatprep.subr.bf16.mxu0 0
        %254 = vmatpush1.bf16.msra.mxu0 0
        %255 = vmatprep.subr.bf16.mxu0 0
        %256 = vmatpush1.bf16.msra.mxu0 0
        %257 = vmatprep.subr.bf16.mxu0 0
        %258 = vmatpush1.bf16.msra.mxu0 0
        %259 = vmatprep.subr.bf16.mxu0 0
        %260 = vmatpush1.bf16.msra.mxu0 0
        %261 = vmatprep.subr.bf16.mxu0 0
        %262 = vmatpush1.bf16.msra.mxu0 0
        %263 = vmatprep.subr.bf16.mxu0 0
        %264 = vmatpush1.bf16.msra.mxu0 0
        %265 = vmatprep.subr.bf16.mxu0 0
        %266 = vmatpush1.bf16.msra.mxu0 0
        %267 = vmatprep.subr.bf16.mxu0 0
        %268 = vmatpush1.bf16.msra.mxu0 0
        %269 = vmatprep.mubr.bf16.mxu0 0
        %270 = vmatmul.mubr.bf16.gmra.mrb[0].mxu0 %v235
        %v271 = vpop.f32.mrb[0].mxu0
        %v272 = vadd.f32 0.0, %v271
        %v273 = vpop.f32.mrb[0].mxu0
        %v274 = vadd.f32 0.0, %v273
        %v275 = vpop.f32.mrb[0].mxu0
        %v276 = vadd.f32 0.0, %v275
        %v277 = vpop.f32.mrb[0].mxu0
        %v278 = vadd.f32 0.0, %v277
        %279 = vdwg.mxu0
        %v280 = vpack.c.bf16 %v276, %v272
        %v281 = vpack.c.bf16 %v278, %v274
        %v284 = vunpack.c.l.b16 %v280
        %v285 = vunpack.c.l.b16 %v281
        %v286 = vunpack.c.h.b16 %v280
        %v287 = vunpack.c.h.b16 %v281
        %v288 = vpack.c.b16 %v285, %v284
        %v289 = vpack.c.b16 %v287, %v286
        %292 = vst [vmem:[%s176] sm:$0xff] %v288
        %293 = vst [vmem:[%s176 + $0x8] sm:$0xff] %v289
        %s294 = sand.u32 %s75, 1
        %s295 = scalar_lea.sflag [#allocation4], %s294
        %s296 = sand.u32 %s75, 1
        %s297 = smul.addr %s296, 16
        %s298 = scalar_lea.vmem [#allocation7], %s297
        // Predicated region
        $region37: #{tpu_custom_call.1} parent=27 // pred_check
          %p299 = pneg %p85
        $region38: #{tpu_custom_call.1} parent=27 // pred_check_branch
          %301 = sbr.rel (%p299) target = $region40
        $region39: #{tpu_custom_call.1} parent=27 // pred_region
          %s303 = ssub.s32 256, 256
          %304 = vsyncadd %s295, %s303
          %s305 = smul.addr %s20, 4
          %s306 = smul.addr %s305, 64
          %s307 = scalar_lea.hbm %s2, %s306
          %s308 = sshll.u32 %s298, 4
          %s309 = int_to_ptr.vmem [resolvable:$true] %s308
          %314 = dma.vmem_to_hbm [thread:$0]  %s309, 256, %s307, %s295, 128, 128, 8
        $region40: #{tpu_custom_call.1} parent=27 // pred_fallthru
          _
      $region28: #{tpu_custom_call.1} parent=5 // pred_fallthru
        _
      %p315 = scmp.le.s32.totalorder 2, %s15
      // Predicated region
      $region41: #{tpu_custom_call.1} parent=5 // pred_check
        %p316 = pneg %p315
      $region42: #{tpu_custom_call.1} parent=5 // pred_check_branch
        %318 = sbr.rel (%p316) target = $region44
      $region43: #{tpu_custom_call.1} parent=5 // pred_region
        %s319 = ssub.s32 %s15, 2
        // Predicated region
        $region45: #{tpu_custom_call.1} parent=43 // pred_check
          %p320 = pneg %p91
        $region46: #{tpu_custom_call.1} parent=43 // pred_check_branch
          %322 = sbr.rel (%p320) target = $region48
        $region47: #{tpu_custom_call.1} parent=43 // pred_region
          %s323 = sand.u32 %s76, 1
          %s324 = scalar_lea.sflag [#allocation4], %s323
          %s325 = sand.u32 %s76, 1
          %s326 = smul.addr %s325, 16
          %s327 = scalar_lea.vmem [#allocation7], %s326
          %328 = dma.done %s324, 256
        $region48: #{tpu_custom_call.1} parent=43 // pred_fallthru
          _
      $region44: #{tpu_custom_call.1} parent=5 // pred_fallthru
        _
    $region6: #{tpu_custom_call.1} parent=1 // loop_footer
      %s19 = sadd.s32 1, %s15
    $region7: #{tpu_custom_call.1} parent=1 // loop_footer_branch
      %14 = sbr.rel target = $region3
    $region8: #{tpu_custom_call.1} parent=1 // loop_exit
      _
    %329 = vsyncpa [#allocation3], 1
    %s330 = scalar_lea.sflag [#allocation3], 1
    %331 = vsyncpa %s330, 1
    %332 = vsyncpa [#allocation6], 1
    %333 = vsyncpa [#allocation4], 1
    %s334 = scalar_lea.sflag [#allocation4], 1
    %335 = vsyncpa %s334, 1

</llo_original>
